<compile_context>
chip_gen: v6e
topology: v6e:2x2x1
jax: 0.10.0
libtpu: 0.0.40
codegen_flags: <defaults>
</compile_context>

<pallas_src>
import functools

import jax
import jax.numpy as jnp
from jax.experimental import pallas as pl
from jax.experimental.pallas import tpu as pltpu

LEAKY_SLOPE = 0.01     # nn.LeakyReLU default
LN_EPS = 1e-5          # nn.LayerNorm default
LANE = 128             # lane (last-dim) tiling granularity
BATCH_ALIGN = 16       # sublane alignment safe for bf16-packed batch tiles
MAX_TILE_B = 512       # amortizes ~0.35us/step overhead, near HBM roofline


def _round_up(v, m):
    return (v + m - 1) // m * m


def _mlp_kernel(x_ref, *refs, real_dims, use_layer_norm):
    """Fused multi-layer MLP for one batch tile.

    refs = (w_0, b_0, w_1, b_1, ..., o_ref)
      x_ref: (TILE_B, P_in) bf16   w_l: (P_l_in, P_l_out) bf16   b_l: (1, P_l_out) f32
      o_ref: (TILE_B, P_out) f32
    Feature dims are zero-padded to multiples of 128. `real_dims[l+1]` is the true
    feature count of layer l's output, used to correct the LayerNorm statistics.
    """
    n_layers = len(real_dims) - 1
    o_ref = refs[-1]

    h = x_ref[...]  # bf16
    for l in range(n_layers):
        w_ref = refs[2 * l]
        b_ref = refs[2 * l + 1]
        d_out = real_dims[l + 1]  # static python int

        # MXU matmul: bf16 operands, f32 accumulation.
        y = jnp.dot(h.astype(jnp.bfloat16), w_ref[...],
                    preferred_element_type=jnp.float32)
        y = y + b_ref[...]  # f32 bias, broadcast over rows

        if use_layer_norm:
            # Padded output lanes are exact zeros after the linear (zero weight
            # columns + zero bias), so both sums are unaffected by padding and the
            # one-pass E[y^2] - mean^2 form is valid with inv_d = 1/d_out.
            inv_d = 1.0 / float(d_out)
            mean = jnp.sum(y, axis=-1, keepdims=True) * inv_d
            msq = jnp.sum(y * y, axis=-1, keepdims=True) * inv_d
            var = jnp.maximum(msq - mean * mean, 0.0)
            y = (y - mean) * jax.lax.rsqrt(var + LN_EPS)

        # LeakyReLU in f32 (v5e has no bf16 VPU path). Dropout = identity (eval).
        y = jnp.where(y >= 0.0, y, LEAKY_SLOPE * y)
        h = y
        # Padded lanes of h may be nonzero after LN, but the next layer's weight
        # rows for those lanes are zero, so they contribute nothing.

    o_ref[...] = h.astype(o_ref.dtype)


class PallasMLP:
    """Mirror of multigrate MLP: FCLayers(n_in, n_out, n_layers, n_hidden,
    dropout_rate=0.1, use_layer_norm=True, use_batch_norm=False,
    activation_fn=LeakyReLU), evaluated in inference mode."""

    def __init__(self, n_input, n_output, n_layers=1, n_hidden=128,
                 normalization="layer", key=None):
        # TODO(synk): normalization == "batch" (BatchNorm1d running stats) and
        # training-mode dropout are not implemented; multigrate's default
        # normalization='layer' eval path is what this kernel covers.
        self.use_layer_norm = normalization == "layer"
        self.dims = [n_input] + (n_layers - 1) * [n_hidden] + [n_output]
        self.padded_dims = [_round_up(d, LANE) for d in self.dims]
        self._single_buf_ok = None  # resolved on first call (pl.Buffered(1) probe)

        # VMEM budget: query the chip; conservative 64 MiB fallback (= v7x per-TC).
        try:
            phys = int(pltpu.get_tpu_info().vmem_capacity_bytes)
        except Exception:
            phys = 64 * 1024 * 1024
        self._vmem_cap = max(32 * 1024 * 1024, phys - 16 * 1024 * 1024)

        if key is None:
            key = jax.random.PRNGKey(0)

        # params: list of (W_pad (P_in, P_out) bf16, b_pad (1, P_out) f32)
        self.params = []
        for (d_in, d_out), (p_in, p_out) in zip(
                zip(self.dims[:-1], self.dims[1:]),
                zip(self.padded_dims[:-1], self.padded_dims[1:])):
            key, kw, kb = jax.random.split(key, 3)
            # Deterministic init, kaiming-uniform-ish bound like torch Linear.
            bound = 1.0 / float(d_in) ** 0.5
            w = jax.random.uniform(kw, (d_out, d_in), jnp.float32, -bound, bound)
            b = jax.random.uniform(kb, (d_out,), jnp.float32, -bound, bound)
            w_pad = jnp.zeros((p_in, p_out), jnp.float32).at[:d_in, :d_out].set(w.T)
            b_pad = jnp.zeros((1, p_out), jnp.float32).at[:, :d_out].set(b)
            self.params.append((w_pad.astype(jnp.bfloat16), b_pad))

    # ---- VMEM budgeting / tiling -------------------------------------------

    def _vmem_need(self, tile_b, weight_buffers=2):
        d0_p, dl_p = self.padded_dims[0], self.padded_dims[-1]
        max_pd = max(self.padded_dims)
        w_bytes = sum(w.size * 2 + b.size * 4 for w, b in self.params) * weight_buffers
        in_bytes = 2 * tile_b * d0_p * 2      # bf16 input, double-buffered
        out_bytes = 2 * tile_b * dl_p * 4     # f32 output, double-buffered
        work = 2 * tile_b * max_pd * 4        # live f32 activation headroom
        return w_bytes + in_bytes + out_bytes + work

    def _pick_tile_b(self, B):
        if B <= BATCH_ALIGN:
            tile_b = _round_up(max(B, 1), BATCH_ALIGN)
        else:
            # >=2 grid steps so v7x's two TensorCores both get a share of the batch.
            tile_b = min(MAX_TILE_B, _round_up(pl.cdiv(B, 2), BATCH_ALIGN))
        budget = self._vmem_cap - (8 << 20)
        while tile_b > BATCH_ALIGN and self._vmem_need(tile_b) > budget:
            tile_b = _round_up(tile_b // 2, BATCH_ALIGN)
        # TODO(synk): if the resident weight set alone exceeds the budget (very
        # large n_hidden on v7x), stream weight tiles per layer instead of
        # keeping all layers resident.
        return tile_b

    # ---- pallas_call construction -------------------------------------------

    def _run(self, x_in, tile_b, single_buffer_weights):
        b_pad, d0_p = x_in.shape
        dl_p = self.padded_dims[-1]
        grid = (b_pad // tile_b,)

        in_specs = [pl.BlockSpec((tile_b, d0_p), lambda i: (i, 0))]
        flat_args = [x_in]
        for w_p, b_p in self.params:
            if single_buffer_weights:
                # Grid-invariant operands: single-buffer to halve their VMEM use.
                in_specs.append(pl.BlockSpec(w_p.shape, lambda i: (0, 0),
                                             pipeline_mode=pl.Buffered(1)))
                in_specs.append(pl.BlockSpec(b_p.shape, lambda i: (0, 0),
                                             pipeline_mode=pl.Buffered(1)))
            else:
                in_specs.append(pl.BlockSpec(w_p.shape, lambda i: (0, 0)))
                in_specs.append(pl.BlockSpec(b_p.shape, lambda i: (0, 0)))
            flat_args += [w_p, b_p]
        out_spec = pl.BlockSpec((tile_b, dl_p), lambda i: (i, 0))

        n_layers = len(self.dims) - 1
        flops = 2 * b_pad * sum(pi * po for pi, po in
                                zip(self.padded_dims[:-1], self.padded_dims[1:]))
        bytes_accessed = (x_in.size * 2 + b_pad * dl_p * 4
                          + sum(w.size * 2 + b_.size * 4 for w, b_ in self.params))
        need = self._vmem_need(tile_b, 1 if single_buffer_weights else 2)
        vmem_limit = int(min(self._vmem_cap, max(32 << 20, need + (8 << 20))))

        kernel = functools.partial(_mlp_kernel, real_dims=tuple(self.dims),
                                   use_layer_norm=self.use_layer_norm)
        return pl.pallas_call(
            kernel,
            out_shape=jax.ShapeDtypeStruct((b_pad, dl_p), jnp.float32),
            grid=grid,
            in_specs=in_specs,
            out_specs=out_spec,
            compiler_params=pltpu.CompilerParams(
                dimension_semantics=("parallel",),   # v7x: shard batch over 2 TCs
                vmem_limit_bytes=vmem_limit),
            cost_estimate=pl.CostEstimate(
                flops=flops,
                transcendentals=b_pad * n_layers if self.use_layer_norm else 0,
                bytes_accessed=bytes_accessed),
        )(*flat_args)

    def __call__(self, x):
        B, d_in = x.shape
        assert d_in == self.dims[0]
        d0_p = self.padded_dims[0]

        tile_b = self._pick_tile_b(B)
        b_pad = _round_up(B, tile_b)

        # Stream the input as bf16 (halves the only per-tile streamed HBM traffic
        # besides the output; the kernel truncates to bf16 before the MXU anyway).
        # Materialize padding only when actually required.
        x_bf = x.astype(jnp.bfloat16)
        if b_pad != B or d0_p != d_in:
            x_in = jnp.pad(x_bf, ((0, b_pad - B), (0, d0_p - d_in)))
        else:
            x_in = x_bf

        if self._single_buf_ok is None:
            try:
                out_pad = self._run(x_in, tile_b, True)
                self._single_buf_ok = True
            except Exception:
                # pipeline_mode=pl.Buffered(1) unsupported on this jax version:
                # fall back to default (double-buffered) weight specs.
                self._single_buf_ok = False
                out_pad = self._run(x_in, tile_b, False)
        else:
            out_pad = self._run(x_in, tile_b, self._single_buf_ok)
        return out_pad[:B, :self.dims[-1]]


# ---- pure-JAX reference emulating the kernel semantics ----------------------

def reference_forward(mlp, x):
    h = x.astype(jnp.float32)
    for (w_p, b_p), (di, do) in zip(mlp.params, zip(mlp.dims[:-1], mlp.dims[1:])):
        w = w_p[:di, :do].astype(jnp.float32)
        b = b_p[0, :do]
        # bf16 matmul operands, f32 accumulation (matches MXU path).
        y = h.astype(jnp.bfloat16).astype(jnp.float32) @ w + b
        if mlp.use_layer_norm:
            m = jnp.mean(y, axis=-1, keepdims=True)
            v = jnp.mean((y - m) ** 2, axis=-1, keepdims=True)
            y = (y - m) / jnp.sqrt(v + LN_EPS)
        h = jnp.where(y >= 0, y, LEAKY_SLOPE * y)
    return h


if __name__ == "__main__":
    key = jax.random.PRNGKey(0)
    kx, kx2, kp = jax.random.split(key, 3)

    n_input = 32
    n_hidden = 64
    n_output = 16
    n_layers = 2

    mlp = PallasMLP(n_input, n_output, n_layers=n_layers, n_hidden=n_hidden,
                    normalization="layer", key=kp)

    # Case 1: small batch, single grid step.
    x = jax.random.normal(kx, (8, n_input), jnp.float32)
    out = jax.block_until_ready(mlp(x))
    assert out.shape == (8, n_output), out.shape
    assert out.dtype == jnp.float32
    assert bool(jnp.all(jnp.isfinite(out)))
    ref = reference_forward(mlp, x)
    assert jnp.allclose(out, ref, atol=2e-3, rtol=2e-3), \
        float(jnp.max(jnp.abs(out - ref)))

    # Case 2: batch needing padding and a >=2-step grid (v7x 2-TC sharding path).
    x2 = jax.random.normal(kx2, (20, n_input), jnp.float32)
    out2 = jax.block_until_ready(mlp(x2))
    assert out2.shape == (20, n_output), out2.shape
    ref2 = reference_forward(mlp, x2)
    assert jnp.allclose(out2, ref2, atol=2e-3, rtol=2e-3), \
        float(jnp.max(jnp.abs(out2 - ref2)))

    print("KERNEL_OK")
</pallas_src>

<mosaic_0001>
module attributes {stable_mosaic.version = 11 : i64} {
  func.func @_mlp_kernel(%arg0: i32, %arg1: memref<16x128xbf16, #tpu.memory_space<vmem>>, %arg2: memref<128x128xbf16, #tpu.memory_space<vmem>>, %arg3: memref<1x128xf32, #tpu.memory_space<vmem>>, %arg4: memref<128x128xbf16, #tpu.memory_space<vmem>>, %arg5: memref<1x128xf32, #tpu.memory_space<vmem>>, %arg6: memref<16x128xf32, #tpu.memory_space<vmem>>) attributes {dimension_semantics = [#tpu.dimension_semantics<parallel>], iteration_bounds = array<i64: 1>, scalar_prefetch = 0 : i64, scratch_operands = 0 : i64, tpu.core_type = #tpu.core_type<tc>, window_params = [{transform_indices = @transform_0, window_bounds = array<i64: 16, 128>}, {pipeline_mode = #tpu.pipeline_mode<synchronous>, transform_indices = @transform_1, window_bounds = array<i64: 128, 128>}, {pipeline_mode = #tpu.pipeline_mode<synchronous>, transform_indices = @transform_2, window_bounds = array<i64: 1, 128>}, {pipeline_mode = #tpu.pipeline_mode<synchronous>, transform_indices = @transform_3, window_bounds = array<i64: 128, 128>}, {pipeline_mode = #tpu.pipeline_mode<synchronous>, transform_indices = @transform_4, window_bounds = array<i64: 1, 128>}, {transform_indices = @transform_5, window_bounds = array<i64: 16, 128>}]} {
    %c0 = arith.constant 0 : index
    %c0_0 = arith.constant 0 : index
    %0 = vector.load %arg1[%c0, %c0_0] : memref<16x128xbf16, #tpu.memory_space<vmem>>, vector<16x128xbf16>
    %c0_1 = arith.constant 0 : index
    %c0_2 = arith.constant 0 : index
    %1 = vector.load %arg2[%c0_1, %c0_2] : memref<128x128xbf16, #tpu.memory_space<vmem>>, vector<128x128xbf16>
    %cst = arith.constant dense<0.000000e+00> : vector<16x128xf32>
    %2 = tpu.matmul %0, %1, %cst {dimension_numbers = #tpu.dot_dimension_numbers<[1], [0], [0], [1], [0, 0, 1, 1], [], []>} : vector<16x128xbf16>, vector<128x128xbf16>, vector<16x128xf32> -> vector<16x128xf32>
    %c0_3 = arith.constant 0 : index
    %c0_4 = arith.constant 0 : index
    %3 = vector.load %arg3[%c0_3, %c0_4] : memref<1x128xf32, #tpu.memory_space<vmem>>, vector<1x128xf32>
    %4 = vector.broadcast %3 : vector<1x128xf32> to vector<16x128xf32>
    %5 = arith.addf %2, %4 : vector<16x128xf32>
    %cst_5 = arith.constant dense<0.000000e+00> : vector<16xf32>
    %6 = vector.multi_reduction <add>, %5, %cst_5 [1] : vector<16x128xf32> to vector<16xf32>
    %7 = vector.shape_cast %6 : vector<16xf32> to vector<16x1xf32>
    %cst_6 = arith.constant 1.562500e-02 : f32
    %8 = vector.broadcast %cst_6 : f32 to vector<16x1xf32>
    %9 = arith.mulf %7, %8 : vector<16x1xf32>
    %10 = arith.mulf %5, %5 : vector<16x128xf32>
    %cst_7 = arith.constant dense<0.000000e+00> : vector<16xf32>
    %11 = vector.multi_reduction <add>, %10, %cst_7 [1] : vector<16x128xf32> to vector<16xf32>
    %12 = vector.shape_cast %11 : vector<16xf32> to vector<16x1xf32>
    %cst_8 = arith.constant 1.562500e-02 : f32
    %13 = vector.broadcast %cst_8 : f32 to vector<16x1xf32>
    %14 = arith.mulf %12, %13 : vector<16x1xf32>
    %15 = arith.mulf %9, %9 : vector<16x1xf32>
    %16 = arith.subf %14, %15 : vector<16x1xf32>
    %cst_9 = arith.constant 0.000000e+00 : f32
    %17 = vector.broadcast %cst_9 : f32 to vector<16x1xf32>
    %18 = arith.maximumf %16, %17 : vector<16x1xf32>
    %19 = vector.broadcast %9 : vector<16x1xf32> to vector<16x128xf32>
    %20 = arith.subf %5, %19 : vector<16x128xf32>
    %cst_10 = arith.constant 9.99999974E-6 : f32
    %21 = vector.broadcast %cst_10 : f32 to vector<16x1xf32>
    %22 = arith.addf %18, %21 : vector<16x1xf32>
    %23 = math.rsqrt %22 : vector<16x1xf32>
    %24 = vector.broadcast %23 : vector<16x1xf32> to vector<16x128xf32>
    %25 = arith.mulf %20, %24 : vector<16x128xf32>
    %cst_11 = arith.constant 0.000000e+00 : f32
    %26 = vector.broadcast %cst_11 : f32 to vector<16x128xf32>
    %27 = arith.cmpf oge, %25, %26 : vector<16x128xf32>
    %cst_12 = arith.constant 0.00999999977 : f32
    %28 = vector.broadcast %cst_12 : f32 to vector<16x128xf32>
    %29 = arith.mulf %28, %25 : vector<16x128xf32>
    %30 = arith.select %27, %25, %29 : vector<16x128xi1>, vector<16x128xf32>
    %31 = arith.truncf %30 : vector<16x128xf32> to vector<16x128xbf16>
    %c0_13 = arith.constant 0 : index
    %c0_14 = arith.constant 0 : index
    %32 = vector.load %arg4[%c0_13, %c0_14] : memref<128x128xbf16, #tpu.memory_space<vmem>>, vector<128x128xbf16>
    %cst_15 = arith.constant dense<0.000000e+00> : vector<16x128xf32>
    %33 = tpu.matmul %31, %32, %cst_15 {dimension_numbers = #tpu.dot_dimension_numbers<[1], [0], [0], [1], [0, 0, 1, 1], [], []>} : vector<16x128xbf16>, vector<128x128xbf16>, vector<16x128xf32> -> vector<16x128xf32>
    %c0_16 = arith.constant 0 : index
    %c0_17 = arith.constant 0 : index
    %34 = vector.load %arg5[%c0_16, %c0_17] : memref<1x128xf32, #tpu.memory_space<vmem>>, vector<1x128xf32>
    %35 = vector.broadcast %34 : vector<1x128xf32> to vector<16x128xf32>
    %36 = arith.addf %33, %35 : vector<16x128xf32>
    %cst_18 = arith.constant dense<0.000000e+00> : vector<16xf32>
    %37 = vector.multi_reduction <add>, %36, %cst_18 [1] : vector<16x128xf32> to vector<16xf32>
    %38 = vector.shape_cast %37 : vector<16xf32> to vector<16x1xf32>
    %cst_19 = arith.constant 6.250000e-02 : f32
    %39 = vector.broadcast %cst_19 : f32 to vector<16x1xf32>
    %40 = arith.mulf %38, %39 : vector<16x1xf32>
    %41 = arith.mulf %36, %36 : vector<16x128xf32>
    %cst_20 = arith.constant dense<0.000000e+00> : vector<16xf32>
    %42 = vector.multi_reduction <add>, %41, %cst_20 [1] : vector<16x128xf32> to vector<16xf32>
    %43 = vector.shape_cast %42 : vector<16xf32> to vector<16x1xf32>
    %cst_21 = arith.constant 6.250000e-02 : f32
    %44 = vector.broadcast %cst_21 : f32 to vector<16x1xf32>
    %45 = arith.mulf %43, %44 : vector<16x1xf32>
    %46 = arith.mulf %40, %40 : vector<16x1xf32>
    %47 = arith.subf %45, %46 : vector<16x1xf32>
    %cst_22 = arith.constant 0.000000e+00 : f32
    %48 = vector.broadcast %cst_22 : f32 to vector<16x1xf32>
    %49 = arith.maximumf %47, %48 : vector<16x1xf32>
    %50 = vector.broadcast %40 : vector<16x1xf32> to vector<16x128xf32>
    %51 = arith.subf %36, %50 : vector<16x128xf32>
    %cst_23 = arith.constant 9.99999974E-6 : f32
    %52 = vector.broadcast %cst_23 : f32 to vector<16x1xf32>
    %53 = arith.addf %49, %52 : vector<16x1xf32>
    %54 = math.rsqrt %53 : vector<16x1xf32>
    %55 = vector.broadcast %54 : vector<16x1xf32> to vector<16x128xf32>
    %56 = arith.mulf %51, %55 : vector<16x128xf32>
    %cst_24 = arith.constant 0.000000e+00 : f32
    %57 = vector.broadcast %cst_24 : f32 to vector<16x128xf32>
    %58 = arith.cmpf oge, %56, %57 : vector<16x128xf32>
    %cst_25 = arith.constant 0.00999999977 : f32
    %59 = vector.broadcast %cst_25 : f32 to vector<16x128xf32>
    %60 = arith.mulf %59, %56 : vector<16x128xf32>
    %61 = arith.select %58, %56, %60 : vector<16x128xi1>, vector<16x128xf32>
    %c0_26 = arith.constant 0 : index
    %c0_27 = arith.constant 0 : index
    %62 = vector.load %arg6[%c0_26, %c0_27] : memref<16x128xf32, #tpu.memory_space<vmem>>, vector<16x128xf32>
    tpu.vector_store %arg6[%c0_26, %c0_27], %61 {strides = array<i32>} : memref<16x128xf32, #tpu.memory_space<vmem>>, vector<16x128xf32>,
    return
  }
  func.func @transform_0(%arg0: i32) -> (i32, i32) {
    %c0_i32 = arith.constant 0 : i32
    %c0_i32_0 = arith.constant 0 : i32
    return %arg0, %c0_i32 : i32, i32
  }
  func.func @transform_1(%arg0: i32) -> (i32, i32) {
    %c0_i32 = arith.constant 0 : i32
    %c0_i32_0 = arith.constant 0 : i32
    %c0_i32_1 = arith.constant 0 : i32
    return %c0_i32, %c0_i32_0 : i32, i32
  }
  func.func @transform_2(%arg0: i32) -> (i32, i32) {
    %c0_i32 = arith.constant 0 : i32
    %c0_i32_0 = arith.constant 0 : i32
    %c0_i32_1 = arith.constant 0 : i32
    return %c0_i32, %c0_i32_0 : i32, i32
  }
  func.func @transform_3(%arg0: i32) -> (i32, i32) {
    %c0_i32 = arith.constant 0 : i32
    %c0_i32_0 = arith.constant 0 : i32
    %c0_i32_1 = arith.constant 0 : i32
    return %c0_i32, %c0_i32_0 : i32, i32
  }
  func.func @transform_4(%arg0: i32) -> (i32, i32) {
    %c0_i32 = arith.constant 0 : i32
    %c0_i32_0 = arith.constant 0 : i32
    %c0_i32_1 = arith.constant 0 : i32
    return %c0_i32, %c0_i32_0 : i32, i32
  }
  func.func @transform_5(%arg0: i32) -> (i32, i32) {
    %c0_i32 = arith.constant 0 : i32
    %c0_i32_0 = arith.constant 0 : i32
    return %arg0, %c0_i32 : i32, i32
  }
}

module attributes {stable_mosaic.version = 11 : i64} {
  func.func @_mlp_kernel(%arg0: i32, %arg1: memref<16x128xbf16, #tpu.memory_space<vmem>>, %arg2: memref<128x128xbf16, #tpu.memory_space<vmem>>, %arg3: memref<1x128xf32, #tpu.memory_space<vmem>>, %arg4: memref<128x128xbf16, #tpu.memory_space<vmem>>, %arg5: memref<1x128xf32, #tpu.memory_space<vmem>>, %arg6: memref<16x128xf32, #tpu.memory_space<vmem>>) attributes {dimension_semantics = [#tpu.dimension_semantics<parallel>], iteration_bounds = array<i64: 1>, scalar_prefetch = 0 : i64, scratch_operands = 0 : i64, tpu.core_type = #tpu.core_type<tc>, window_params = [{transform_indices = @transform_0, window_bounds = array<i64: 16, 128>}, {pipeline_mode = #tpu.pipeline_mode<synchronous>, transform_indices = @transform_1, window_bounds = array<i64: 128, 128>}, {pipeline_mode = #tpu.pipeline_mode<synchronous>, transform_indices = @transform_2, window_bounds = array<i64: 1, 128>}, {pipeline_mode = #tpu.pipeline_mode<synchronous>, transform_indices = @transform_3, window_bounds = array<i64: 128, 128>}, {pipeline_mode = #tpu.pipeline_mode<synchronous>, transform_indices = @transform_4, window_bounds = array<i64: 1, 128>}, {transform_indices = @transform_5, window_bounds = array<i64: 16, 128>}]} {
    %c0 = arith.constant 0 : index
    %c0_0 = arith.constant 0 : index
    %0 = vector.load %arg1[%c0, %c0_0] : memref<16x128xbf16, #tpu.memory_space<vmem>>, vector<16x128xbf16>
    %c0_1 = arith.constant 0 : index
    %c0_2 = arith.constant 0 : index
    %1 = vector.load %arg2[%c0_1, %c0_2] : memref<128x128xbf16, #tpu.memory_space<vmem>>, vector<128x128xbf16>
    %cst = arith.constant dense<0.000000e+00> : vector<16x128xf32>
    %2 = tpu.matmul %0, %1, %cst {dimension_numbers = #tpu.dot_dimension_numbers<[1], [0], [0], [1], [0, 0, 1, 1], [], []>} : vector<16x128xbf16>, vector<128x128xbf16>, vector<16x128xf32> -> vector<16x128xf32>
    %c0_3 = arith.constant 0 : index
    %c0_4 = arith.constant 0 : index
    %3 = vector.load %arg3[%c0_3, %c0_4] : memref<1x128xf32, #tpu.memory_space<vmem>>, vector<1x128xf32>
    %4 = vector.broadcast %3 : vector<1x128xf32> to vector<16x128xf32>
    %5 = arith.addf %2, %4 : vector<16x128xf32>
    %cst_5 = arith.constant dense<0.000000e+00> : vector<16xf32>
    %6 = vector.multi_reduction <add>, %5, %cst_5 [1] : vector<16x128xf32> to vector<16xf32>
    %7 = vector.shape_cast %6 : vector<16xf32> to vector<16x1xf32>
    %cst_6 = arith.constant 1.562500e-02 : f32
    %8 = vector.broadcast %cst_6 : f32 to vector<16x1xf32>
    %9 = arith.mulf %7, %8 : vector<16x1xf32>
    %10 = arith.mulf %5, %5 : vector<16x128xf32>
    %cst_7 = arith.constant dense<0.000000e+00> : vector<16xf32>
    %11 = vector.multi_reduction <add>, %10, %cst_7 [1] : vector<16x128xf32> to vector<16xf32>
    %12 = vector.shape_cast %11 : vector<16xf32> to vector<16x1xf32>
    %cst_8 = arith.constant 1.562500e-02 : f32
    %13 = vector.broadcast %cst_8 : f32 to vector<16x1xf32>
    %14 = arith.mulf %12, %13 : vector<16x1xf32>
    %15 = arith.mulf %9, %9 : vector<16x1xf32>
    %16 = arith.subf %14, %15 : vector<16x1xf32>
    %cst_9 = arith.constant 0.000000e+00 : f32
    %17 = vector.broadcast %cst_9 : f32 to vector<16x1xf32>
    %18 = arith.maximumf %16, %17 : vector<16x1xf32>
    %19 = vector.broadcast %9 : vector<16x1xf32> to vector<16x128xf32>
    %20 = arith.subf %5, %19 : vector<16x128xf32>
    %cst_10 = arith.constant 9.99999974E-6 : f32
    %21 = vector.broadcast %cst_10 : f32 to vector<16x1xf32>
    %22 = arith.addf %18, %21 : vector<16x1xf32>
    %23 = math.rsqrt %22 : vector<16x1xf32>
    %24 = vector.broadcast %23 : vector<16x1xf32> to vector<16x128xf32>
    %25 = arith.mulf %20, %24 : vector<16x128xf32>
    %cst_11 = arith.constant 0.000000e+00 : f32
    %26 = vector.broadcast %cst_11 : f32 to vector<16x128xf32>
    %27 = arith.cmpf oge, %25, %26 : vector<16x128xf32>
    %cst_12 = arith.constant 0.00999999977 : f32
    %28 = vector.broadcast %cst_12 : f32 to vector<16x128xf32>
    %29 = arith.mulf %28, %25 : vector<16x128xf32>
    %30 = arith.select %27, %25, %29 : vector<16x128xi1>, vector<16x128xf32>
    %31 = arith.truncf %30 : vector<16x128xf32> to vector<16x128xbf16>
    %c0_13 = arith.constant 0 : index
    %c0_14 = arith.constant 0 : index
    %32 = vector.load %arg4[%c0_13, %c0_14] : memref<128x128xbf16, #tpu.memory_space<vmem>>, vector<128x128xbf16>
    %cst_15 = arith.constant dense<0.000000e+00> : vector<16x128xf32>
    %33 = tpu.matmul %31, %32, %cst_15 {dimension_numbers = #tpu.dot_dimension_numbers<[1], [0], [0], [1], [0, 0, 1, 1], [], []>} : vector<16x128xbf16>, vector<128x128xbf16>, vector<16x128xf32> -> vector<16x128xf32>
    %c0_16 = arith.constant 0 : index
    %c0_17 = arith.constant 0 : index
    %34 = vector.load %arg5[%c0_16, %c0_17] : memref<1x128xf32, #tpu.memory_space<vmem>>, vector<1x128xf32>
    %35 = vector.broadcast %34 : vector<1x128xf32> to vector<16x128xf32>
    %36 = arith.addf %33, %35 : vector<16x128xf32>
    %cst_18 = arith.constant dense<0.000000e+00> : vector<16xf32>
    %37 = vector.multi_reduction <add>, %36, %cst_18 [1] : vector<16x128xf32> to vector<16xf32>
    %38 = vector.shape_cast %37 : vector<16xf32> to vector<16x1xf32>
    %cst_19 = arith.constant 6.250000e-02 : f32
    %39 = vector.broadcast %cst_19 : f32 to vector<16x1xf32>
    %40 = arith.mulf %38, %39 : vector<16x1xf32>
    %41 = arith.mulf %36, %36 : vector<16x128xf32>
    %cst_20 = arith.constant dense<0.000000e+00> : vector<16xf32>
    %42 = vector.multi_reduction <add>, %41, %cst_20 [1] : vector<16x128xf32> to vector<16xf32>
    %43 = vector.shape_cast %42 : vector<16xf32> to vector<16x1xf32>
    %cst_21 = arith.constant 6.250000e-02 : f32
    %44 = vector.broadcast %cst_21 : f32 to vector<16x1xf32>
    %45 = arith.mulf %43, %44 : vector<16x1xf32>
    %46 = arith.mulf %40, %40 : vector<16x1xf32>
    %47 = arith.subf %45, %46 : vector<16x1xf32>
    %cst_22 = arith.constant 0.000000e+00 : f32
    %48 = vector.broadcast %cst_22 : f32 to vector<16x1xf32>
    %49 = arith.maximumf %47, %48 : vector<16x1xf32>
    %50 = vector.broadcast %40 : vector<16x1xf32> to vector<16x128xf32>
    %51 = arith.subf %36, %50 : vector<16x128xf32>
    %cst_23 = arith.constant 9.99999974E-6 : f32
    %52 = vector.broadcast %cst_23 : f32 to vector<16x1xf32>
    %53 = arith.addf %49, %52 : vector<16x1xf32>
    %54 = math.rsqrt %53 : vector<16x1xf32>
    %55 = vector.broadcast %54 : vector<16x1xf32> to vector<16x128xf32>
    %56 = arith.mulf %51, %55 : vector<16x128xf32>
    %cst_24 = arith.constant 0.000000e+00 : f32
    %57 = vector.broadcast %cst_24 : f32 to vector<16x128xf32>
    %58 = arith.cmpf oge, %56, %57 : vector<16x128xf32>
    %cst_25 = arith.constant 0.00999999977 : f32
    %59 = vector.broadcast %cst_25 : f32 to vector<16x128xf32>
    %60 = arith.mulf %59, %56 : vector<16x128xf32>
    %61 = arith.select %58, %56, %60 : vector<16x128xi1>, vector<16x128xf32>
    %c0_26 = arith.constant 0 : index
    %c0_27 = arith.constant 0 : index
    %62 = vector.load %arg6[%c0_26, %c0_27] : memref<16x128xf32, #tpu.memory_space<vmem>>, vector<16x128xf32>
    tpu.vector_store %arg6[%c0_26, %c0_27], %61 {strides = array<i32>} : memref<16x128xf32, #tpu.memory_space<vmem>>, vector<16x128xf32>,
    return
  }
  func.func @transform_0(%arg0: i32) -> (i32, i32) {
    %c0_i32 = arith.constant 0 : i32
    %c0_i32_0 = arith.constant 0 : i32
    return %arg0, %c0_i32 : i32, i32
  }
  func.func @transform_1(%arg0: i32) -> (i32, i32) {
    %c0_i32 = arith.constant 0 : i32
    %c0_i32_0 = arith.constant 0 : i32
    %c0_i32_1 = arith.constant 0 : i32
    return %c0_i32, %c0_i32_0 : i32, i32
  }
  func.func @transform_2(%arg0: i32) -> (i32, i32) {
    %c0_i32 = arith.constant 0 : i32
    %c0_i32_0 = arith.constant 0 : i32
    %c0_i32_1 = arith.constant 0 : i32
    return %c0_i32, %c0_i32_0 : i32, i32
  }
  func.func @transform_3(%arg0: i32) -> (i32, i32) {
    %c0_i32 = arith.constant 0 : i32
    %c0_i32_0 = arith.constant 0 : i32
    %c0_i32_1 = arith.constant 0 : i32
    return %c0_i32, %c0_i32_0 : i32, i32
  }
  func.func @transform_4(%arg0: i32) -> (i32, i32) {
    %c0_i32 = arith.constant 0 : i32
    %c0_i32_0 = arith.constant 0 : i32
    %c0_i32_1 = arith.constant 0 : i32
    return %c0_i32, %c0_i32_0 : i32, i32
  }
  func.func @transform_5(%arg0: i32) -> (i32, i32) {
    %c0_i32 = arith.constant 0 : i32
    %c0_i32_0 = arith.constant 0 : i32
    return %arg0, %c0_i32 : i32, i32
  }
}

</mosaic_0001>

<llo_original>
// kernel: tpu_custom_call.1
$region0: #{tpu_custom_call.1}
  #allocation0 [shape = 'u32[]', space=smem, size = 0x4, offset = 0x4, fixed_abs, tag = 'smem constant byte address 0x4 - core index']
  #allocation1 [shape = 'u32[144,128]{1,0:T(1,128)}', space=vmem, size = 0x12000, scoped, tag = 'internal scratch']
  %s0 = inlined_call_operand.hbm [shape: bf16[16,128], index: 0, kind: input, shape index: {}]
  %s1 = inlined_call_operand.hbm [shape: bf16[128,128], index: 1, kind: input, shape index: {}]
  %s2 = inlined_call_operand.vmem [shape: f32[1,128], index: 2, kind: input, shape index: {}]
  %s3 = inlined_call_operand.hbm [shape: bf16[128,128], index: 3, kind: input, shape index: {}]
  %s4 = inlined_call_operand.vmem [shape: f32[1,128], index: 4, kind: input, shape index: {}]
  %s5 = inlined_call_operand.hbm [shape: f32[16,128], index: 5, kind: output, shape index: {}]
  %s6 = sld [smem:[#allocation0]]
  $region42: #{tpu_custom_call.1} parent=0
    _
  %s8 = ssub.s32 1, %s6
  %s9 = scalar_select 0, %s8, %s6
  $region1: #{tpu_custom_call.1} parent=0
    #allocation2 [shape = 'u8[4096]{0}', space=vmem, size = 0x1000, scoped, tag = 'input window, operand 0, single buffered']
    #allocation3 [shape = 's32[1]{0}', space=sflag, size = 0x4, scoped, tag = 'scoped memory for tpu_custom_call.1']
    #allocation4 [shape = 's32[1]{0}', space=sflag, size = 0x4, scoped, tag = 'scoped memory for tpu_custom_call.1']
    #allocation5 [shape = 'u8[32768]{0}', space=vmem, size = 0x8000, scoped, tag = 'input window, operand 1, single buffered']
    #allocation6 [shape = 's32[1]{0}', space=sflag, size = 0x4, scoped, tag = 'scoped memory for tpu_custom_call.1']
    #allocation7 [shape = 'u8[32768]{0}', space=vmem, size = 0x8000, scoped, tag = 'input window, operand 3, single buffered']
    #allocation8 [shape = 'u8[8192]{0}', space=vmem, size = 0x2000, scoped, tag = 'output window, operand 0, single buffered']
    %10 = vsyncpa [#allocation3], 0
    %11 = vsyncpa [#allocation6], 0
    %12 = vsyncpa [#allocation4], 0
    // Predicated region
    $region2: #{tpu_custom_call.1} parent=1 // pred_check
      _
    $region3: #{tpu_custom_call.1} parent=1 // pred_check_branch
      %14 = sbr.rel (0) target = $region5
    $region4: #{tpu_custom_call.1} parent=1 // pred_region
      %s16 = ssub.s32 128, 128
      %17 = vsyncadd [#allocation3], %s16
      %s18 = sshll.u32 [#allocation2], 4
      %s19 = int_to_ptr.vmem [resolvable:$true] %s18
      %24 = dma.hbm_to_vmem [thread:$0]  %s0, 128, %s19, [#allocation3], 64, 64, 4
    $region5: #{tpu_custom_call.1} parent=1 // pred_fallthru
      _
    // Predicated region
    $region6: #{tpu_custom_call.1} parent=1 // pred_check
      _
    $region7: #{tpu_custom_call.1} parent=1 // pred_check_branch
      %26 = sbr.rel (0) target = $region9
    $region8: #{tpu_custom_call.1} parent=1 // pred_region
      %s28 = ssub.s32 1024, 1024
      %29 = vsyncadd [#allocation6], %s28
      %s30 = sshll.u32 [#allocation5], 4
      %s31 = int_to_ptr.vmem [resolvable:$true] %s30
      %36 = dma.hbm_to_vmem [thread:$0]  %s1, 1024, %s31, [#allocation6], 64, 64, 4
    $region9: #{tpu_custom_call.1} parent=1 // pred_fallthru
      _
    // Predicated region
    $region10: #{tpu_custom_call.1} parent=1 // pred_check
      _
    $region11: #{tpu_custom_call.1} parent=1 // pred_check_branch
      %38 = sbr.rel (0) target = $region13
    $region12: #{tpu_custom_call.1} parent=1 // pred_region
      _
    $region13: #{tpu_custom_call.1} parent=1 // pred_fallthru
      _
    // Predicated region
    $region14: #{tpu_custom_call.1} parent=1 // pred_check
      _
    $region15: #{tpu_custom_call.1} parent=1 // pred_check_branch
      %40 = sbr.rel (0) target = $region17
    $region16: #{tpu_custom_call.1} parent=1 // pred_region
      %s42 = ssub.s32 1024, 1024
      %43 = vsyncadd [#allocation6], %s42
      %s44 = sshll.u32 [#allocation7], 4
      %s45 = int_to_ptr.vmem [resolvable:$true] %s44
      %50 = dma.hbm_to_vmem [thread:$0]  %s3, 1024, %s45, [#allocation6], 64, 64, 4
    $region17: #{tpu_custom_call.1} parent=1 // pred_fallthru
      _
    // Predicated region
    $region18: #{tpu_custom_call.1} parent=1 // pred_check
      _
    $region19: #{tpu_custom_call.1} parent=1 // pred_check_branch
      %52 = sbr.rel (0) target = $region21
    $region20: #{tpu_custom_call.1} parent=1 // pred_region
      _
    $region21: #{tpu_custom_call.1} parent=1 // pred_fallthru
      _
    // Predicated region
    $region22: #{tpu_custom_call.1} parent=1 // pred_check
      _
    $region23: #{tpu_custom_call.1} parent=1 // pred_check_branch
      %54 = sbr.rel (0) target = $region25
    $region24: #{tpu_custom_call.1} parent=1 // pred_region
      %55 = dma.done [#allocation3], 128
    $region25: #{tpu_custom_call.1} parent=1 // pred_fallthru
      _
    // Predicated region
    $region26: #{tpu_custom_call.1} parent=1 // pred_check
      _
    $region27: #{tpu_custom_call.1} parent=1 // pred_check_branch
      %57 = sbr.rel (0) target = $region29
    $region28: #{tpu_custom_call.1} parent=1 // pred_region
      %58 = dma.done [#allocation6], 1024
    $region29: #{tpu_custom_call.1} parent=1 // pred_fallthru
      _
    // Predicated region
    $region30: #{tpu_custom_call.1} parent=1 // pred_check
      _
    $region31: #{tpu_custom_call.1} parent=1 // pred_check_branch
      %60 = sbr.rel (0) target = $region33
    $region32: #{tpu_custom_call.1} parent=1 // pred_region
      %61 = dma.done [#allocation6], 1024
    $region33: #{tpu_custom_call.1} parent=1 // pred_fallthru
      _
    %v63 = vld [vmem:[#allocation2] sm:$0xf]
    %v64 = vld [vmem:[#allocation2 + $0x4] sm:$0xf]
    %v65 = vld [vmem:[#allocation5] sm:$0xf]
    %v66 = vld [vmem:[#allocation5 + $0x4] sm:$0xf]
    %v67 = vld [vmem:[#allocation5 + $0x8] sm:$0xf]
    %v68 = vld [vmem:[#allocation5 + $0xc] sm:$0xf]
    %v69 = vld [vmem:[#allocation5 + $0x10] sm:$0xf]
    %v70 = vld [vmem:[#allocation5 + $0x14] sm:$0xf]
    %v71 = vld [vmem:[#allocation5 + $0x18] sm:$0xf]
    %v72 = vld [vmem:[#allocation5 + $0x1c] sm:$0xf]
    %v73 = vld [vmem:[#allocation5 + $0x20] sm:$0xf]
    %v74 = vld [vmem:[#allocation5 + $0x24] sm:$0xf]
    %v75 = vld [vmem:[#allocation5 + $0x28] sm:$0xf]
    %v76 = vld [vmem:[#allocation5 + $0x2c] sm:$0xf]
    %v77 = vld [vmem:[#allocation5 + $0x30] sm:$0xf]
    %v78 = vld [vmem:[#allocation5 + $0x34] sm:$0xf]
    %v79 = vld [vmem:[#allocation5 + $0x38] sm:$0xf]
    %v80 = vld [vmem:[#allocation5 + $0x3c] sm:$0xf]
    %v81 = vld [vmem:[%s2] sm:$0x1]
    %v83 = vlaneseq
    %v84 = vshrl.u32 %v83, 7
    %v85 = vsub.s32 0, %v84
    %v86 = vrot.slane %v81, %v85
    %v90 = vunpack.c.l.b16 %v63
    %v91 = vunpack.c.l.b16 %v64
    %v92 = vpack.c.b16 %v91, %v90
    %v110 = vunpack.c.l.b16 %v65
    %v111 = vunpack.c.l.b16 %v66
    %v112 = vunpack.c.l.b16 %v67
    %v113 = vunpack.c.l.b16 %v68
    %v114 = vunpack.c.l.b16 %v69
    %v115 = vunpack.c.l.b16 %v70
    %v116 = vunpack.c.l.b16 %v71
    %v117 = vunpack.c.l.b16 %v72
    %v118 = vunpack.c.l.b16 %v73
    %v119 = vunpack.c.l.b16 %v74
    %v120 = vunpack.c.l.b16 %v75
    %v121 = vunpack.c.l.b16 %v76
    %v122 = vunpack.c.l.b16 %v77
    %v123 = vunpack.c.l.b16 %v78
    %v124 = vunpack.c.l.b16 %v79
    %v125 = vunpack.c.l.b16 %v80
    %v126 = vpack.c.b16 %v111, %v110
    %v127 = vpack.c.b16 %v113, %v112
    %v128 = vpack.c.b16 %v115, %v114
    %v129 = vpack.c.b16 %v117, %v116
    %v130 = vpack.c.b16 %v119, %v118
    %v131 = vpack.c.b16 %v121, %v120
    %v132 = vpack.c.b16 %v123, %v122
    %v133 = vpack.c.b16 %v125, %v124
    %142 = vmatprep.subr.bf16.mxu0 0
    %143 = vmatpush1.bf16.msra.mxu0 %v133
    %144 = vmatprep.subr.bf16.mxu0 0
    %145 = vmatpush1.bf16.msra.mxu0 %v132
    %146 = vmatprep.subr.bf16.mxu0 0
    %147 = vmatpush1.bf16.msra.mxu0 %v131
    %148 = vmatprep.subr.bf16.mxu0 0
    %149 = vmatpush1.bf16.msra.mxu0 %v130
    %150 = vmatprep.subr.bf16.mxu0 0
    %151 = vmatpush1.bf16.msra.mxu0 %v129
    %152 = vmatprep.subr.bf16.mxu0 0
    %153 = vmatpush1.bf16.msra.mxu0 %v128
    %154 = vmatprep.subr.bf16.mxu0 0
    %155 = vmatpush1.bf16.msra.mxu0 %v127
    %156 = vmatprep.subr.bf16.mxu0 0
    %157 = vmatpush1.bf16.msra.mxu0 %v126
    %158 = vmatprep.subr.bf16.mxu0 0
    %159 = vmatpush2.bf16.msra.mxu0 0
    %160 = vmatprep.subr.bf16.mxu0 0
    %161 = vmatpush2.bf16.msra.mxu0 0
    %162 = vmatprep.subr.bf16.mxu0 0
    %163 = vmatpush2.bf16.msra.mxu0 0
    %164 = vmatprep.subr.bf16.mxu0 0
    %165 = vmatpush2.bf16.msra.mxu0 0
    %166 = vmatprep.subr.bf16.mxu0 0
    %167 = vmatpush2.bf16.msra.mxu0 0
    %168 = vmatprep.subr.bf16.mxu0 0
    %169 = vmatpush2.bf16.msra.mxu0 0
    %170 = vmatprep.subr.bf16.mxu0 0
    %171 = vmatpush2.bf16.msra.mxu0 0
    %172 = vmatprep.subr.bf16.mxu0 0
    %173 = vmatpush2.bf16.msra.mxu0 0
    %174 = vmatprep.mubr.bf16.mxu0 0
    %175 = vmatmul.mubr.bf16.gmra.mxu0 %v92
    %v176 = vpop.f32.mrf.mxu0
    %v177 = vadd.f32 %v86, %v176
    %v178 = vpop.f32.mrf.mxu0
    %v179 = vpop.f32.mrf.mxu0
    %v180 = vadd.f32 %v86, %v179
    %v181 = vpop.f32.mrf.mxu0
    %182 = vdwg.mxu0
    %183 = vadd.xlane.f32.xlu0 %v177
    %v184 = vpop.xlane.xlu0 %183
    %185 = vadd.xlane.f32.xlu0 %v180
    %v186 = vpop.xlane.xlu0 %185
    %v187 = vmul.f32 %v184, 0.015625
    %v188 = vmul.f32 %v186, 0.015625
    %v189 = vmul.f32 %v177, %v177
    %v190 = vmul.f32 %v180, %v180
    %191 = vadd.xlane.f32.xlu0 %v189
    %v192 = vpop.xlane.xlu0 %191
    %193 = vadd.xlane.f32.xlu0 %v190
    %v194 = vpop.xlane.xlu0 %193
    %v195 = vmul.f32 %v192, 0.015625
    %v196 = vmul.f32 %v194, 0.015625
    %v197 = vmul.f32 %v187, %v187
    %v198 = vmul.f32 %v188, %v188
    %v199 = vsub.f32 %v195, %v197
    %v200 = vsub.f32 %v196, %v198
    %v201 = vmax.f32 %v199, 0.0
    %v202 = vmax.f32 %v200, 0.0
    %v203 = vsub.f32 %v177, %v187
    %v204 = vsub.f32 %v180, %v188
    %v205 = vadd.f32 %v201, 1e-05
    %v206 = vadd.f32 %v202, 1e-05
    %v207 = vrsqrt.pop %v205
    %v208 = vrsqrt.pop %v206
    %v209 = vmul.f32 %v203, %v207
    %v210 = vmul.f32 %v204, %v208
    %vm211 = vcmp.ge.f32.partialorder %v209, 0.0
    %vm212 = vcmp.ge.f32.partialorder %v210, 0.0
    %v213 = vmul.f32 %v209, 0.01
    %v214 = vmul.f32 %v210, 0.01
    %v215 = vsel %vm211, %v209, %v213
    %v216 = vsel %vm212, %v210, %v214
    %v217 = vpack.c.bf16 %v216, %v215
    %v218 = vld [vmem:[#allocation7] sm:$0xf]
    %v219 = vld [vmem:[#allocation7 + $0x4] sm:$0xf]
    %v220 = vld [vmem:[#allocation7 + $0x8] sm:$0xf]
    %v221 = vld [vmem:[#allocation7 + $0xc] sm:$0xf]
    %v222 = vld [vmem:[#allocation7 + $0x10] sm:$0xf]
    %v223 = vld [vmem:[#allocation7 + $0x14] sm:$0xf]
    %v224 = vld [vmem:[#allocation7 + $0x18] sm:$0xf]
    %v225 = vld [vmem:[#allocation7 + $0x1c] sm:$0xf]
    %v226 = vld [vmem:[#allocation7 + $0x20] sm:$0xf]
    %v227 = vld [vmem:[#allocation7 + $0x24] sm:$0xf]
    %v228 = vld [vmem:[#allocation7 + $0x28] sm:$0xf]
    %v229 = vld [vmem:[#allocation7 + $0x2c] sm:$0xf]
    %v230 = vld [vmem:[#allocation7 + $0x30] sm:$0xf]
    %v231 = vld [vmem:[#allocation7 + $0x34] sm:$0xf]
    %v232 = vld [vmem:[#allocation7 + $0x38] sm:$0xf]
    %v233 = vld [vmem:[#allocation7 + $0x3c] sm:$0xf]
    %v234 = vld [vmem:[%s4] sm:$0x1]
    %v236 = vlaneseq
    %v237 = vshrl.u32 %v236, 7
    %v238 = vsub.s32 0, %v237
    %v239 = vrot.slane %v234, %v238
    %v257 = vunpack.c.l.b16 %v218
    %v258 = vunpack.c.l.b16 %v219
    %v259 = vunpack.c.l.b16 %v220
    %v260 = vunpack.c.l.b16 %v221
    %v261 = vunpack.c.l.b16 %v222
    %v262 = vunpack.c.l.b16 %v223
    %v263 = vunpack.c.l.b16 %v224
    %v264 = vunpack.c.l.b16 %v225
    %v265 = vunpack.c.l.b16 %v226
    %v266 = vunpack.c.l.b16 %v227
    %v267 = vunpack.c.l.b16 %v228
    %v268 = vunpack.c.l.b16 %v229
    %v269 = vunpack.c.l.b16 %v230
    %v270 = vunpack.c.l.b16 %v231
    %v271 = vunpack.c.l.b16 %v232
    %v272 = vunpack.c.l.b16 %v233
    %v273 = vpack.c.b16 %v258, %v257
    %v274 = vpack.c.b16 %v260, %v259
    %v275 = vpack.c.b16 %v262, %v261
    %v276 = vpack.c.b16 %v264, %v263
    %v277 = vpack.c.b16 %v266, %v265
    %v278 = vpack.c.b16 %v268, %v267
    %v279 = vpack.c.b16 %v270, %v269
    %v280 = vpack.c.b16 %v272, %v271
    %289 = vmatprep.subr.bf16.mxu0 0
    %290 = vmatpush1.bf16.msra.mxu0 %v280
    %291 = vmatprep.subr.bf16.mxu0 0
    %292 = vmatpush1.bf16.msra.mxu0 %v279
    %293 = vmatprep.subr.bf16.mxu0 0
    %294 = vmatpush1.bf16.msra.mxu0 %v278
    %295 = vmatprep.subr.bf16.mxu0 0
    %296 = vmatpush1.bf16.msra.mxu0 %v277
    %297 = vmatprep.subr.bf16.mxu0 0
    %298 = vmatpush1.bf16.msra.mxu0 %v276
    %299 = vmatprep.subr.bf16.mxu0 0
    %300 = vmatpush1.bf16.msra.mxu0 %v275
    %301 = vmatprep.subr.bf16.mxu0 0
    %302 = vmatpush1.bf16.msra.mxu0 %v274
    %303 = vmatprep.subr.bf16.mxu0 0
    %304 = vmatpush1.bf16.msra.mxu0 %v273
    %305 = vmatprep.subr.bf16.mxu0 0
    %306 = vmatpush2.bf16.msra.mxu0 0
    %307 = vmatprep.subr.bf16.mxu0 0
    %308 = vmatpush2.bf16.msra.mxu0 0
    %309 = vmatprep.subr.bf16.mxu0 0
    %310 = vmatpush2.bf16.msra.mxu0 0
    %311 = vmatprep.subr.bf16.mxu0 0
    %312 = vmatpush2.bf16.msra.mxu0 0
    %313 = vmatprep.subr.bf16.mxu0 0
    %314 = vmatpush2.bf16.msra.mxu0 0
    %315 = vmatprep.subr.bf16.mxu0 0
    %316 = vmatpush2.bf16.msra.mxu0 0
    %317 = vmatprep.subr.bf16.mxu0 0
    %318 = vmatpush2.bf16.msra.mxu0 0
    %319 = vmatprep.subr.bf16.mxu0 0
    %320 = vmatpush2.bf16.msra.mxu0 0
    %321 = vmatprep.mubr.bf16.mxu0 0
    %322 = vmatmul.mubr.bf16.gmra.mxu0 %v217
    %v323 = vpop.f32.mrf.mxu0
    %v324 = vadd.f32 %v239, %v323
    %v325 = vpop.f32.mrf.mxu0
    %v326 = vpop.f32.mrf.mxu0
    %v327 = vadd.f32 %v239, %v326
    %v328 = vpop.f32.mrf.mxu0
    %329 = vdwg.mxu0
    %330 = vadd.xlane.f32.xlu0 %v324
    %v331 = vpop.xlane.xlu0 %330
    %332 = vadd.xlane.f32.xlu0 %v327
    %v333 = vpop.xlane.xlu0 %332
    %v334 = vmul.f32 %v331, 0.0625
    %v335 = vmul.f32 %v333, 0.0625
    %v336 = vmul.f32 %v324, %v324
    %v337 = vmul.f32 %v327, %v327
    %338 = vadd.xlane.f32.xlu0 %v336
    %v339 = vpop.xlane.xlu0 %338
    %340 = vadd.xlane.f32.xlu0 %v337
    %v341 = vpop.xlane.xlu0 %340
    %v342 = vmul.f32 %v339, 0.0625
    %v343 = vmul.f32 %v341, 0.0625
    %v344 = vmul.f32 %v334, %v334
    %v345 = vmul.f32 %v335, %v335
    %v346 = vsub.f32 %v342, %v344
    %v347 = vsub.f32 %v343, %v345
    %v348 = vmax.f32 %v346, 0.0
    %v349 = vmax.f32 %v347, 0.0
    %v350 = vsub.f32 %v324, %v334
    %v351 = vsub.f32 %v327, %v335
    %v352 = vadd.f32 %v348, 1e-05
    %v353 = vadd.f32 %v349, 1e-05
    %v354 = vrsqrt.pop %v352
    %v355 = vrsqrt.pop %v353
    %v356 = vmul.f32 %v350, %v354
    %v357 = vmul.f32 %v351, %v355
    %vm358 = vcmp.ge.f32.partialorder %v356, 0.0
    %vm359 = vcmp.ge.f32.partialorder %v357, 0.0
    %v360 = vmul.f32 %v356, 0.01
    %v361 = vmul.f32 %v357, 0.01
    %v362 = vsel %vm358, %v356, %v360
    %v363 = vsel %vm359, %v357, %v361
    %364 = vst [vmem:[#allocation8] sm:$0xff] %v362
    %365 = vst [vmem:[#allocation8 + $0x8] sm:$0xff] %v363
    // Predicated region
    $region34: #{tpu_custom_call.1} parent=1 // pred_check
      _
    $region35: #{tpu_custom_call.1} parent=1 // pred_check_branch
      %367 = sbr.rel (0) target = $region37
    $region36: #{tpu_custom_call.1} parent=1 // pred_region
      %s369 = ssub.s32 256, 256
      %370 = vsyncadd [#allocation4], %s369
      %s371 = sshll.u32 [#allocation8], 4
      %s372 = int_to_ptr.vmem [resolvable:$true] %s371
      %377 = dma.vmem_to_hbm [thread:$0]  %s372, 256, %s5, [#allocation4], 128, 128, 8
    $region37: #{tpu_custom_call.1} parent=1 // pred_fallthru
      _
    // Predicated region
    $region38: #{tpu_custom_call.1} parent=1 // pred_check
      _
    $region39: #{tpu_custom_call.1} parent=1 // pred_check_branch
      %379 = sbr.rel (0) target = $region41
    $region40: #{tpu_custom_call.1} parent=1 // pred_region
      %380 = dma.done [#allocation4], 256
    $region41: #{tpu_custom_call.1} parent=1 // pred_fallthru
      _
    %381 = vsyncpa [#allocation3], 1
    %382 = vsyncpa [#allocation6], 1
    %383 = vsyncpa [#allocation4], 1

// kernel: tpu_custom_call.1
$region0: #{tpu_custom_call.1}
  #allocation0 [shape = 'u32[]', space=smem, size = 0x4, offset = 0x4, fixed_abs, tag = 'smem constant byte address 0x4 - core index']
  #allocation1 [shape = 'u32[144,128]{1,0:T(1,128)}', space=vmem, size = 0x12000, scoped, tag = 'internal scratch']
  %s0 = inlined_call_operand.hbm [shape: bf16[16,128], index: 0, kind: input, shape index: {}]
  %s1 = inlined_call_operand.hbm [shape: bf16[128,128], index: 1, kind: input, shape index: {}]
  %s2 = inlined_call_operand.vmem [shape: f32[1,128], index: 2, kind: input, shape index: {}]
  %s3 = inlined_call_operand.hbm [shape: bf16[128,128], index: 3, kind: input, shape index: {}]
  %s4 = inlined_call_operand.vmem [shape: f32[1,128], index: 4, kind: input, shape index: {}]
  %s5 = inlined_call_operand.hbm [shape: f32[16,128], index: 5, kind: output, shape index: {}]
  %s6 = sld [smem:[#allocation0]]
  $region42: #{tpu_custom_call.1} parent=0
    _
  %s8 = ssub.s32 1, %s6
  %s9 = scalar_select 0, %s8, %s6
  $region1: #{tpu_custom_call.1} parent=0
    #allocation2 [shape = 'u8[4096]{0}', space=vmem, size = 0x1000, scoped, tag = 'input window, operand 0, single buffered']
    #allocation3 [shape = 's32[1]{0}', space=sflag, size = 0x4, scoped, tag = 'scoped memory for tpu_custom_call.1']
    #allocation4 [shape = 's32[1]{0}', space=sflag, size = 0x4, scoped, tag = 'scoped memory for tpu_custom_call.1']
    #allocation5 [shape = 'u8[32768]{0}', space=vmem, size = 0x8000, scoped, tag = 'input window, operand 1, single buffered']
    #allocation6 [shape = 's32[1]{0}', space=sflag, size = 0x4, scoped, tag = 'scoped memory for tpu_custom_call.1']
    #allocation7 [shape = 'u8[32768]{0}', space=vmem, size = 0x8000, scoped, tag = 'input window, operand 3, single buffered']
    #allocation8 [shape = 'u8[8192]{0}', space=vmem, size = 0x2000, scoped, tag = 'output window, operand 0, single buffered']
    %10 = vsyncpa [#allocation3], 0
    %11 = vsyncpa [#allocation6], 0
    %12 = vsyncpa [#allocation4], 0
    // Predicated region
    $region2: #{tpu_custom_call.1} parent=1 // pred_check
      _
    $region3: #{tpu_custom_call.1} parent=1 // pred_check_branch
      %14 = sbr.rel (0) target = $region5
    $region4: #{tpu_custom_call.1} parent=1 // pred_region
      %s16 = ssub.s32 128, 128
      %17 = vsyncadd [#allocation3], %s16
      %s18 = sshll.u32 [#allocation2], 4
      %s19 = int_to_ptr.vmem [resolvable:$true] %s18
      %24 = dma.hbm_to_vmem [thread:$0]  %s0, 128, %s19, [#allocation3], 64, 64, 4
    $region5: #{tpu_custom_call.1} parent=1 // pred_fallthru
      _
    // Predicated region
    $region6: #{tpu_custom_call.1} parent=1 // pred_check
      _
    $region7: #{tpu_custom_call.1} parent=1 // pred_check_branch
      %26 = sbr.rel (0) target = $region9
    $region8: #{tpu_custom_call.1} parent=1 // pred_region
      %s28 = ssub.s32 1024, 1024
      %29 = vsyncadd [#allocation6], %s28
      %s30 = sshll.u32 [#allocation5], 4
      %s31 = int_to_ptr.vmem [resolvable:$true] %s30
      %36 = dma.hbm_to_vmem [thread:$0]  %s1, 1024, %s31, [#allocation6], 64, 64, 4
    $region9: #{tpu_custom_call.1} parent=1 // pred_fallthru
      _
    // Predicated region
    $region10: #{tpu_custom_call.1} parent=1 // pred_check
      _
    $region11: #{tpu_custom_call.1} parent=1 // pred_check_branch
      %38 = sbr.rel (0) target = $region13
    $region12: #{tpu_custom_call.1} parent=1 // pred_region
      _
    $region13: #{tpu_custom_call.1} parent=1 // pred_fallthru
      _
    // Predicated region
    $region14: #{tpu_custom_call.1} parent=1 // pred_check
      _
    $region15: #{tpu_custom_call.1} parent=1 // pred_check_branch
      %40 = sbr.rel (0) target = $region17
    $region16: #{tpu_custom_call.1} parent=1 // pred_region
      %s42 = ssub.s32 1024, 1024
      %43 = vsyncadd [#allocation6], %s42
      %s44 = sshll.u32 [#allocation7], 4
      %s45 = int_to_ptr.vmem [resolvable:$true] %s44
      %50 = dma.hbm_to_vmem [thread:$0]  %s3, 1024, %s45, [#allocation6], 64, 64, 4
    $region17: #{tpu_custom_call.1} parent=1 // pred_fallthru
      _
    // Predicated region
    $region18: #{tpu_custom_call.1} parent=1 // pred_check
      _
    $region19: #{tpu_custom_call.1} parent=1 // pred_check_branch
      %52 = sbr.rel (0) target = $region21
    $region20: #{tpu_custom_call.1} parent=1 // pred_region
      _
    $region21: #{tpu_custom_call.1} parent=1 // pred_fallthru
      _
    // Predicated region
    $region22: #{tpu_custom_call.1} parent=1 // pred_check
      _
    $region23: #{tpu_custom_call.1} parent=1 // pred_check_branch
      %54 = sbr.rel (0) target = $region25
    $region24: #{tpu_custom_call.1} parent=1 // pred_region
      %55 = dma.done [#allocation3], 128
    $region25: #{tpu_custom_call.1} parent=1 // pred_fallthru
      _
    // Predicated region
    $region26: #{tpu_custom_call.1} parent=1 // pred_check
      _
    $region27: #{tpu_custom_call.1} parent=1 // pred_check_branch
      %57 = sbr.rel (0) target = $region29
    $region28: #{tpu_custom_call.1} parent=1 // pred_region
      %58 = dma.done [#allocation6], 1024
    $region29: #{tpu_custom_call.1} parent=1 // pred_fallthru
      _
    // Predicated region
    $region30: #{tpu_custom_call.1} parent=1 // pred_check
      _
    $region31: #{tpu_custom_call.1} parent=1 // pred_check_branch
      %60 = sbr.rel (0) target = $region33
    $region32: #{tpu_custom_call.1} parent=1 // pred_region
      %61 = dma.done [#allocation6], 1024
    $region33: #{tpu_custom_call.1} parent=1 // pred_fallthru
      _
    %v63 = vld [vmem:[#allocation2] sm:$0xf]
    %v64 = vld [vmem:[#allocation2 + $0x4] sm:$0xf]
    %v65 = vld [vmem:[#allocation5] sm:$0xf]
    %v66 = vld [vmem:[#allocation5 + $0x4] sm:$0xf]
    %v67 = vld [vmem:[#allocation5 + $0x8] sm:$0xf]
    %v68 = vld [vmem:[#allocation5 + $0xc] sm:$0xf]
    %v69 = vld [vmem:[#allocation5 + $0x10] sm:$0xf]
    %v70 = vld [vmem:[#allocation5 + $0x14] sm:$0xf]
    %v71 = vld [vmem:[#allocation5 + $0x18] sm:$0xf]
    %v72 = vld [vmem:[#allocation5 + $0x1c] sm:$0xf]
    %v73 = vld [vmem:[#allocation5 + $0x20] sm:$0xf]
    %v74 = vld [vmem:[#allocation5 + $0x24] sm:$0xf]
    %v75 = vld [vmem:[#allocation5 + $0x28] sm:$0xf]
    %v76 = vld [vmem:[#allocation5 + $0x2c] sm:$0xf]
    %v77 = vld [vmem:[#allocation5 + $0x30] sm:$0xf]
    %v78 = vld [vmem:[#allocation5 + $0x34] sm:$0xf]
    %v79 = vld [vmem:[#allocation5 + $0x38] sm:$0xf]
    %v80 = vld [vmem:[#allocation5 + $0x3c] sm:$0xf]
    %v81 = vld [vmem:[%s2] sm:$0x1]
    %v83 = vlaneseq
    %v84 = vshrl.u32 %v83, 7
    %v85 = vsub.s32 0, %v84
    %v86 = vrot.slane %v81, %v85
    %v90 = vunpack.c.l.b16 %v63
    %v91 = vunpack.c.l.b16 %v64
    %v92 = vpack.c.b16 %v91, %v90
    %v110 = vunpack.c.l.b16 %v65
    %v111 = vunpack.c.l.b16 %v66
    %v112 = vunpack.c.l.b16 %v67
    %v113 = vunpack.c.l.b16 %v68
    %v114 = vunpack.c.l.b16 %v69
    %v115 = vunpack.c.l.b16 %v70
    %v116 = vunpack.c.l.b16 %v71
    %v117 = vunpack.c.l.b16 %v72
    %v118 = vunpack.c.l.b16 %v73
    %v119 = vunpack.c.l.b16 %v74
    %v120 = vunpack.c.l.b16 %v75
    %v121 = vunpack.c.l.b16 %v76
    %v122 = vunpack.c.l.b16 %v77
    %v123 = vunpack.c.l.b16 %v78
    %v124 = vunpack.c.l.b16 %v79
    %v125 = vunpack.c.l.b16 %v80
    %v126 = vpack.c.b16 %v111, %v110
    %v127 = vpack.c.b16 %v113, %v112
    %v128 = vpack.c.b16 %v115, %v114
    %v129 = vpack.c.b16 %v117, %v116
    %v130 = vpack.c.b16 %v119, %v118
    %v131 = vpack.c.b16 %v121, %v120
    %v132 = vpack.c.b16 %v123, %v122
    %v133 = vpack.c.b16 %v125, %v124
    %142 = vmatprep.subr.bf16.mxu0 0
    %143 = vmatpush1.bf16.msra.mxu0 %v133
    %144 = vmatprep.subr.bf16.mxu0 0
    %145 = vmatpush1.bf16.msra.mxu0 %v132
    %146 = vmatprep.subr.bf16.mxu0 0
    %147 = vmatpush1.bf16.msra.mxu0 %v131
    %148 = vmatprep.subr.bf16.mxu0 0
    %149 = vmatpush1.bf16.msra.mxu0 %v130
    %150 = vmatprep.subr.bf16.mxu0 0
    %151 = vmatpush1.bf16.msra.mxu0 %v129
    %152 = vmatprep.subr.bf16.mxu0 0
    %153 = vmatpush1.bf16.msra.mxu0 %v128
    %154 = vmatprep.subr.bf16.mxu0 0
    %155 = vmatpush1.bf16.msra.mxu0 %v127
    %156 = vmatprep.subr.bf16.mxu0 0
    %157 = vmatpush1.bf16.msra.mxu0 %v126
    %158 = vmatprep.subr.bf16.mxu0 0
    %159 = vmatpush2.bf16.msra.mxu0 0
    %160 = vmatprep.subr.bf16.mxu0 0
    %161 = vmatpush2.bf16.msra.mxu0 0
    %162 = vmatprep.subr.bf16.mxu0 0
    %163 = vmatpush2.bf16.msra.mxu0 0
    %164 = vmatprep.subr.bf16.mxu0 0
    %165 = vmatpush2.bf16.msra.mxu0 0
    %166 = vmatprep.subr.bf16.mxu0 0
    %167 = vmatpush2.bf16.msra.mxu0 0
    %168 = vmatprep.subr.bf16.mxu0 0
    %169 = vmatpush2.bf16.msra.mxu0 0
    %170 = vmatprep.subr.bf16.mxu0 0
    %171 = vmatpush2.bf16.msra.mxu0 0
    %172 = vmatprep.subr.bf16.mxu0 0
    %173 = vmatpush2.bf16.msra.mxu0 0
    %174 = vmatprep.mubr.bf16.mxu0 0
    %175 = vmatmul.mubr.bf16.gmra.mxu0 %v92
    %v176 = vpop.f32.mrf.mxu0
    %v177 = vadd.f32 %v86, %v176
    %v178 = vpop.f32.mrf.mxu0
    %v179 = vpop.f32.mrf.mxu0
    %v180 = vadd.f32 %v86, %v179
    %v181 = vpop.f32.mrf.mxu0
    %182 = vdwg.mxu0
    %183 = vadd.xlane.f32.xlu0 %v177
    %v184 = vpop.xlane.xlu0 %183
    %185 = vadd.xlane.f32.xlu0 %v180
    %v186 = vpop.xlane.xlu0 %185
    %v187 = vmul.f32 %v184, 0.015625
    %v188 = vmul.f32 %v186, 0.015625
    %v189 = vmul.f32 %v177, %v177
    %v190 = vmul.f32 %v180, %v180
    %191 = vadd.xlane.f32.xlu0 %v189
    %v192 = vpop.xlane.xlu0 %191
    %193 = vadd.xlane.f32.xlu0 %v190
    %v194 = vpop.xlane.xlu0 %193
    %v195 = vmul.f32 %v192, 0.015625
    %v196 = vmul.f32 %v194, 0.015625
    %v197 = vmul.f32 %v187, %v187
    %v198 = vmul.f32 %v188, %v188
    %v199 = vsub.f32 %v195, %v197
    %v200 = vsub.f32 %v196, %v198
    %v201 = vmax.f32 %v199, 0.0
    %v202 = vmax.f32 %v200, 0.0
    %v203 = vsub.f32 %v177, %v187
    %v204 = vsub.f32 %v180, %v188
    %v205 = vadd.f32 %v201, 1e-05
    %v206 = vadd.f32 %v202, 1e-05
    %v207 = vrsqrt.pop %v205
    %v208 = vrsqrt.pop %v206
    %v209 = vmul.f32 %v203, %v207
    %v210 = vmul.f32 %v204, %v208
    %vm211 = vcmp.ge.f32.partialorder %v209, 0.0
    %vm212 = vcmp.ge.f32.partialorder %v210, 0.0
    %v213 = vmul.f32 %v209, 0.01
    %v214 = vmul.f32 %v210, 0.01
    %v215 = vsel %vm211, %v209, %v213
    %v216 = vsel %vm212, %v210, %v214
    %v217 = vpack.c.bf16 %v216, %v215
    %v218 = vld [vmem:[#allocation7] sm:$0xf]
    %v219 = vld [vmem:[#allocation7 + $0x4] sm:$0xf]
    %v220 = vld [vmem:[#allocation7 + $0x8] sm:$0xf]
    %v221 = vld [vmem:[#allocation7 + $0xc] sm:$0xf]
    %v222 = vld [vmem:[#allocation7 + $0x10] sm:$0xf]
    %v223 = vld [vmem:[#allocation7 + $0x14] sm:$0xf]
    %v224 = vld [vmem:[#allocation7 + $0x18] sm:$0xf]
    %v225 = vld [vmem:[#allocation7 + $0x1c] sm:$0xf]
    %v226 = vld [vmem:[#allocation7 + $0x20] sm:$0xf]
    %v227 = vld [vmem:[#allocation7 + $0x24] sm:$0xf]
    %v228 = vld [vmem:[#allocation7 + $0x28] sm:$0xf]
    %v229 = vld [vmem:[#allocation7 + $0x2c] sm:$0xf]
    %v230 = vld [vmem:[#allocation7 + $0x30] sm:$0xf]
    %v231 = vld [vmem:[#allocation7 + $0x34] sm:$0xf]
    %v232 = vld [vmem:[#allocation7 + $0x38] sm:$0xf]
    %v233 = vld [vmem:[#allocation7 + $0x3c] sm:$0xf]
    %v234 = vld [vmem:[%s4] sm:$0x1]
    %v236 = vlaneseq
    %v237 = vshrl.u32 %v236, 7
    %v238 = vsub.s32 0, %v237
    %v239 = vrot.slane %v234, %v238
    %v257 = vunpack.c.l.b16 %v218
    %v258 = vunpack.c.l.b16 %v219
    %v259 = vunpack.c.l.b16 %v220
    %v260 = vunpack.c.l.b16 %v221
    %v261 = vunpack.c.l.b16 %v222
    %v262 = vunpack.c.l.b16 %v223
    %v263 = vunpack.c.l.b16 %v224
    %v264 = vunpack.c.l.b16 %v225
    %v265 = vunpack.c.l.b16 %v226
    %v266 = vunpack.c.l.b16 %v227
    %v267 = vunpack.c.l.b16 %v228
    %v268 = vunpack.c.l.b16 %v229
    %v269 = vunpack.c.l.b16 %v230
    %v270 = vunpack.c.l.b16 %v231
    %v271 = vunpack.c.l.b16 %v232
    %v272 = vunpack.c.l.b16 %v233
    %v273 = vpack.c.b16 %v258, %v257
    %v274 = vpack.c.b16 %v260, %v259
    %v275 = vpack.c.b16 %v262, %v261
    %v276 = vpack.c.b16 %v264, %v263
    %v277 = vpack.c.b16 %v266, %v265
    %v278 = vpack.c.b16 %v268, %v267
    %v279 = vpack.c.b16 %v270, %v269
    %v280 = vpack.c.b16 %v272, %v271
    %289 = vmatprep.subr.bf16.mxu0 0
    %290 = vmatpush1.bf16.msra.mxu0 %v280
    %291 = vmatprep.subr.bf16.mxu0 0
    %292 = vmatpush1.bf16.msra.mxu0 %v279
    %293 = vmatprep.subr.bf16.mxu0 0
    %294 = vmatpush1.bf16.msra.mxu0 %v278
    %295 = vmatprep.subr.bf16.mxu0 0
    %296 = vmatpush1.bf16.msra.mxu0 %v277
    %297 = vmatprep.subr.bf16.mxu0 0
    %298 = vmatpush1.bf16.msra.mxu0 %v276
    %299 = vmatprep.subr.bf16.mxu0 0
    %300 = vmatpush1.bf16.msra.mxu0 %v275
    %301 = vmatprep.subr.bf16.mxu0 0
    %302 = vmatpush1.bf16.msra.mxu0 %v274
    %303 = vmatprep.subr.bf16.mxu0 0
    %304 = vmatpush1.bf16.msra.mxu0 %v273
    %305 = vmatprep.subr.bf16.mxu0 0
    %306 = vmatpush2.bf16.msra.mxu0 0
    %307 = vmatprep.subr.bf16.mxu0 0
    %308 = vmatpush2.bf16.msra.mxu0 0
    %309 = vmatprep.subr.bf16.mxu0 0
    %310 = vmatpush2.bf16.msra.mxu0 0
    %311 = vmatprep.subr.bf16.mxu0 0
    %312 = vmatpush2.bf16.msra.mxu0 0
    %313 = vmatprep.subr.bf16.mxu0 0
    %314 = vmatpush2.bf16.msra.mxu0 0
    %315 = vmatprep.subr.bf16.mxu0 0
    %316 = vmatpush2.bf16.msra.mxu0 0
    %317 = vmatprep.subr.bf16.mxu0 0
    %318 = vmatpush2.bf16.msra.mxu0 0
    %319 = vmatprep.subr.bf16.mxu0 0
    %320 = vmatpush2.bf16.msra.mxu0 0
    %321 = vmatprep.mubr.bf16.mxu0 0
    %322 = vmatmul.mubr.bf16.gmra.mxu0 %v217
    %v323 = vpop.f32.mrf.mxu0
    %v324 = vadd.f32 %v239, %v323
    %v325 = vpop.f32.mrf.mxu0
    %v326 = vpop.f32.mrf.mxu0
    %v327 = vadd.f32 %v239, %v326
    %v328 = vpop.f32.mrf.mxu0
    %329 = vdwg.mxu0
    %330 = vadd.xlane.f32.xlu0 %v324
    %v331 = vpop.xlane.xlu0 %330
    %332 = vadd.xlane.f32.xlu0 %v327
    %v333 = vpop.xlane.xlu0 %332
    %v334 = vmul.f32 %v331, 0.0625
    %v335 = vmul.f32 %v333, 0.0625
    %v336 = vmul.f32 %v324, %v324
    %v337 = vmul.f32 %v327, %v327
    %338 = vadd.xlane.f32.xlu0 %v336
    %v339 = vpop.xlane.xlu0 %338
    %340 = vadd.xlane.f32.xlu0 %v337
    %v341 = vpop.xlane.xlu0 %340
    %v342 = vmul.f32 %v339, 0.0625
    %v343 = vmul.f32 %v341, 0.0625
    %v344 = vmul.f32 %v334, %v334
    %v345 = vmul.f32 %v335, %v335
    %v346 = vsub.f32 %v342, %v344
    %v347 = vsub.f32 %v343, %v345
    %v348 = vmax.f32 %v346, 0.0
    %v349 = vmax.f32 %v347, 0.0
    %v350 = vsub.f32 %v324, %v334
    %v351 = vsub.f32 %v327, %v335
    %v352 = vadd.f32 %v348, 1e-05
    %v353 = vadd.f32 %v349, 1e-05
    %v354 = vrsqrt.pop %v352
    %v355 = vrsqrt.pop %v353
    %v356 = vmul.f32 %v350, %v354
    %v357 = vmul.f32 %v351, %v355
    %vm358 = vcmp.ge.f32.partialorder %v356, 0.0
    %vm359 = vcmp.ge.f32.partialorder %v357, 0.0
    %v360 = vmul.f32 %v356, 0.01
    %v361 = vmul.f32 %v357, 0.01
    %v362 = vsel %vm358, %v356, %v360
    %v363 = vsel %vm359, %v357, %v361
    %364 = vst [vmem:[#allocation8] sm:$0xff] %v362
    %365 = vst [vmem:[#allocation8 + $0x8] sm:$0xff] %v363
    // Predicated region
    $region34: #{tpu_custom_call.1} parent=1 // pred_check
      _
    $region35: #{tpu_custom_call.1} parent=1 // pred_check_branch
      %367 = sbr.rel (0) target = $region37
    $region36: #{tpu_custom_call.1} parent=1 // pred_region
      %s369 = ssub.s32 256, 256
      %370 = vsyncadd [#allocation4], %s369
      %s371 = sshll.u32 [#allocation8], 4
      %s372 = int_to_ptr.vmem [resolvable:$true] %s371
      %377 = dma.vmem_to_hbm [thread:$0]  %s372, 256, %s5, [#allocation4], 128, 128, 8
    $region37: #{tpu_custom_call.1} parent=1 // pred_fallthru
      _
    // Predicated region
    $region38: #{tpu_custom_call.1} parent=1 // pred_check
      _
    $region39: #{tpu_custom_call.1} parent=1 // pred_check_branch
      %379 = sbr.rel (0) target = $region41
    $region40: #{tpu_custom_call.1} parent=1 // pred_region
      %380 = dma.done [#allocation4], 256
    $region41: #{tpu_custom_call.1} parent=1 // pred_fallthru
      _
    %381 = vsyncpa [#allocation3], 1
    %382 = vsyncpa [#allocation6], 1
    %383 = vsyncpa [#allocation4], 1

</llo_original>
